<compile_context>
chip_gen: v6e
topology: v6e:2x2x1
jax: 0.10.0
libtpu: 0.0.40
codegen_flags: <defaults>
</compile_context>

<pallas_src>
import math

import numpy as np

import jax
import jax.numpy as jnp
from jax.experimental import pallas as pl
from jax.experimental.pallas import tpu as pltpu


def _round_up(x, m):
    return ((x + m - 1) // m) * m


def _pos_enc_kernel(coords_ref, w_ref, out_ref):
    """coords_ref: (tm, K)  w_ref: (K, Dp)  out_ref: (tm, Dp).

    out = sin(coords_aug @ W).  The last column of coords_aug is a constant 1
    and the last row of W carries the pi/2 phase bias for the cos columns
    (cos(x) = sin(x + pi/2)), so the whole encoding is a tiny MXU contraction
    followed by a single full-lane-width sin pass.  Note: jnp.sin lowers to a
    VPU range-reduction + polynomial (it is NOT an EUP op), so VALU is the
    binding slot on compute-bound generations; everything else here rides the
    MXU / store slots.  Precision.HIGHEST keeps the f32 phase exact enough
    that values match the direct sin/cos formulation to ~1e-4 at |phase|~300.
    """
    phase = jnp.dot(coords_ref[...], w_ref[...],
                    preferred_element_type=jnp.float32,
                    precision=jax.lax.Precision.HIGHEST)
    out_ref[...] = jnp.sin(phase).astype(out_ref.dtype)


def _build_phase_matrix(freqs, coord_dim, out_pad):
    """(C+1, out_pad) phase matrix, built once at module init.

    Row d (< C): frequency scales for coordinate dim d, in output column order
      [sin(x_d * f) for f in freqs] ++ [cos(x_d * f) for f in freqs].
    Row C: the pi/2 phase bias for the cos columns (paired with a constant-1
    coords column).  Padding columns are all zero -> sin(0) = 0, sliced off by
    the wrapper when out_dim is not a multiple of 128.
    """
    freqs = np.asarray(freqs, np.float32)
    F = int(freqs.shape[0])
    C = int(coord_dim)
    w = np.zeros((C + 1, out_pad), np.float32)
    for d in range(C):
        w[d, d * 2 * F: d * 2 * F + F] = freqs
        w[d, d * 2 * F + F: (d + 1) * 2 * F] = freqs
        w[C, d * 2 * F + F: (d + 1) * 2 * F] = 0.5 * np.pi
    return w


def _choose_tm(M, K, out_pad, itemsize, *, tm_max=4096,
               vmem_target=12 * 1024 * 1024, min_steps=8):
    """Row-tile size from a VMEM working-set budget.

    Each grid step holds a double-buffered (coords, out) tile pair.  The coords
    block's last dim is lane-padded to 128 in VMEM, so its footprint is
    tm * round_up(K, 128) * 4 bytes, not tm * K * 4.  tm is additionally
    clamped so that large inputs produce >= min_steps grid steps (v7x needs at
    least 2 steps to use both TensorCores; 8 keeps the megacore split balanced
    while amortizing the ~0.35 us fixed per-step overhead).
    """
    per_row = _round_up(K, 128) * 4 + out_pad * itemsize
    tm = vmem_target // (2 * per_row)                 # double-buffered budget
    tm = min(tm, tm_max)
    tm = min(tm, _round_up(pl.cdiv(M, min_steps), 8))  # >= min_steps grid steps
    return max(8, (tm // 8) * 8)


def position_encode(coords, w_phase, out_dim, *, out_dtype=jnp.float32,
                    tm_max=4096):
    """coords: [B, N, C] float; w_phase: [C+1, out_pad] f32 phase matrix.

    Returns [B, N, out_dim] in out_dtype.  Per coordinate dim d the output
    columns are [sin(x_d * f) for f in freqs] ++ [cos(x_d * f) for f in freqs].
    """
    B, N, C = coords.shape
    K, out_pad = w_phase.shape
    assert K == C + 1, (K, C)
    M = B * N

    itemsize = jnp.dtype(out_dtype).itemsize
    tm = _choose_tm(M, K, out_pad, itemsize, tm_max=tm_max)
    grid = (pl.cdiv(M, tm),)   # final partial tile is mask-handled by Pallas

    coords_flat = coords.reshape(M, C).astype(jnp.float32)
    # Constant-1 column so the cos pi/2 phase bias rides the MXU matmul
    # (removes the in-kernel VALU broadcast-add and one resident input stream).
    coords_aug = jnp.pad(coords_flat, ((0, 0), (0, 1)), constant_values=1.0)

    # VMEM estimate using (8,128)-padded tile sizes (coords block is
    # lane-padded to 128; W is tiny but double-buffered).
    per_row = _round_up(K, 128) * 4 + out_pad * itemsize
    vmem_est = 2 * tm * per_row + 2 * _round_up(K, 8) * out_pad * 4
    vmem_limit = None
    if vmem_est > 12 * 1024 * 1024:
        # Cap well under v7x's 64 MiB physical VMEM (<= 40 MiB).
        vmem_limit = int(min(2 * vmem_est, 40 * 1024 * 1024))

    out_flat = pl.pallas_call(
        _pos_enc_kernel,
        out_shape=jax.ShapeDtypeStruct((M, out_pad), out_dtype),
        grid_spec=pltpu.PrefetchScalarGridSpec(
            num_scalar_prefetch=0,
            grid=grid,
            in_specs=[
                # (tm, K): last dim equals the full array dim -> allowed.
                pl.BlockSpec((tm, K), lambda i: (i, 0)),
                # W is small and grid-resident (same block every step).
                pl.BlockSpec((K, out_pad), lambda i: (0, 0)),
            ],
            out_specs=pl.BlockSpec((tm, out_pad), lambda i: (i, 0)),
        ),
        compiler_params=pltpu.CompilerParams(
            dimension_semantics=("parallel",),
            vmem_limit_bytes=vmem_limit),
    )(coords_aug, w_phase)

    if out_pad != out_dim:
        # TODO(synk): an unfused column slice costs an extra HBM pass; prefer
        # configs where coord_dim * 2 * num_freqs is a multiple of 128.
        out_flat = out_flat[:, :out_dim]
    return out_flat.reshape(B, N, out_dim)


class PositionEncoderPallas:
    """JAX/Pallas counterpart of the (abstract) PyTorch PositionEncoder."""

    def __init__(self, coord_dim=2, num_freqs=32,
                 min_radius=1.0, max_radius=100.0, out_dtype=jnp.float32):
        self.coord_dim = coord_dim
        self.num_freqs = num_freqs
        # out_dtype=jnp.bfloat16 halves output HBM traffic (v5e/v6e are
        # writeback-bound for this kernel); phase/trig math stays in f32
        # regardless, but bf16 output carries ~3e-3 quantization error.
        self.out_dtype = out_dtype

        # Deterministic geometric frequency bands (no learned parameters
        # exist in the reference __init__).
        f = np.arange(num_freqs, dtype=np.float32)
        ratio = f / max(num_freqs - 1, 1)
        wavelengths = min_radius * (max_radius / min_radius) ** ratio
        freqs_np = (2.0 * np.pi / wavelengths).astype(np.float32)
        self.freqs = jnp.asarray(freqs_np)                  # [F]

        self.pos_enc_output_dim = self.cal_pos_enc_output_dim()
        self.out_pad = _round_up(self.pos_enc_output_dim, 128)
        # Phase matrix built once at init (constant w.r.t. every forward call).
        self._w_phase = jnp.asarray(
            _build_phase_matrix(freqs_np, coord_dim, self.out_pad))

    def cal_pos_enc_output_dim(self):
        return self.coord_dim * 2 * self.num_freqs

    def forward(self, coords):
        return position_encode(coords, self._w_phase, self.pos_enc_output_dim,
                               out_dtype=self.out_dtype)

    __call__ = forward


if __name__ == "__main__":
    key = jax.random.PRNGKey(0)
    B, N, coord_dim = 2, 8, 2          # coords: [batch, num_points, coord_dim]
    coords = jax.random.uniform(
        key, (B, N, coord_dim), dtype=jnp.float32, minval=-50.0, maxval=50.0)

    encoder = PositionEncoderPallas(coord_dim=coord_dim, num_freqs=32)
    out = encoder(coords)
    out = jax.block_until_ready(out)

    # Reference check in plain JAX (direct sin/cos formulation).
    scaled = coords[..., :, None] * encoder.freqs[None, None, None, :]  # [B,N,C,F]
    ref = jnp.concatenate(
        [jnp.concatenate([jnp.sin(scaled[..., d, :]),
                          jnp.cos(scaled[..., d, :])], axis=-1)
         for d in range(coord_dim)], axis=-1)
    assert out.shape == (B, N, encoder.pos_enc_output_dim)
    # Tolerance note: the kernel computes cos(x) as sin(x + pi/2) with the
    # phase produced by an f32-HIGHEST MXU matmul (the pi/2 bias rides the
    # matmul via a constant-1 coords column); for |phase| up to ~314 rad this
    # differs from the direct formulation by a few 1e-5 in value.  The 5e-4
    # tolerance only holds for f32 output (bf16 output quantizes to ~3e-3).
    assert jnp.allclose(out, ref, atol=5e-4, rtol=0.0), \
        float(jnp.max(jnp.abs(out - ref)))

    print("KERNEL_OK")
</pallas_src>

<mosaic_0001>
module attributes {stable_mosaic.version = 11 : i64} {
  func.func @_pos_enc_kernel(%arg0: i32, %arg1: memref<8x3xf32, #tpu.memory_space<vmem>>, %arg2: memref<3x128xf32, #tpu.memory_space<vmem>>, %arg3: memref<8x128xf32, #tpu.memory_space<vmem>>) attributes {dimension_semantics = [#tpu.dimension_semantics<parallel>], iteration_bounds = array<i64: 2>, scalar_prefetch = 0 : i64, scratch_operands = 0 : i64, tpu.core_type = #tpu.core_type<tc>, window_params = [{transform_indices = @transform_0, window_bounds = array<i64: 8, 3>}, {pipeline_mode = #tpu.pipeline_mode<synchronous>, transform_indices = @transform_1, window_bounds = array<i64: 3, 128>}, {transform_indices = @transform_2, window_bounds = array<i64: 8, 128>}]} {
    %c0 = arith.constant 0 : index
    %c0_0 = arith.constant 0 : index
    %0 = vector.load %arg1[%c0, %c0_0] : memref<8x3xf32, #tpu.memory_space<vmem>>, vector<8x3xf32>
    %c0_1 = arith.constant 0 : index
    %c0_2 = arith.constant 0 : index
    %1 = vector.load %arg2[%c0_1, %c0_2] : memref<3x128xf32, #tpu.memory_space<vmem>>, vector<3x128xf32>
    %cst = arith.constant dense<0.000000e+00> : vector<8x128xf32>
    %2 = tpu.matmul %0, %1, %cst {dimension_numbers = #tpu.dot_dimension_numbers<[1], [0], [0], [1], [0, 0, 1, 1], [], []>, precision = #tpu.contract_precision<fp32>} : vector<8x3xf32>, vector<3x128xf32>, vector<8x128xf32> -> vector<8x128xf32>
    %3 = math.sin %2 : vector<8x128xf32>
    %c0_3 = arith.constant 0 : index
    %c0_4 = arith.constant 0 : index
    %4 = vector.load %arg3[%c0_3, %c0_4] : memref<8x128xf32, #tpu.memory_space<vmem>>, vector<8x128xf32>
    tpu.vector_store %arg3[%c0_3, %c0_4], %3 {strides = array<i32>} : memref<8x128xf32, #tpu.memory_space<vmem>>, vector<8x128xf32>,
    return
  }
  func.func @transform_0(%arg0: i32) -> (i32, i32) {
    %c0_i32 = arith.constant 0 : i32
    %c0_i32_0 = arith.constant 0 : i32
    return %arg0, %c0_i32 : i32, i32
  }
  func.func @transform_1(%arg0: i32) -> (i32, i32) {
    %c0_i32 = arith.constant 0 : i32
    %c0_i32_0 = arith.constant 0 : i32
    %c0_i32_1 = arith.constant 0 : i32
    return %c0_i32, %c0_i32_0 : i32, i32
  }
  func.func @transform_2(%arg0: i32) -> (i32, i32) {
    %c0_i32 = arith.constant 0 : i32
    %c0_i32_0 = arith.constant 0 : i32
    return %arg0, %c0_i32 : i32, i32
  }
}

</mosaic_0001>

<llo_original>
// kernel: tpu_custom_call.1
$region0: #{tpu_custom_call.1}
  #allocation0 [shape = 'u32[]', space=smem, size = 0x4, offset = 0x4, fixed_abs, tag = 'smem constant byte address 0x4 - core index']
  #allocation1 [shape = 'u32[144,128]{1,0:T(1,128)}', space=vmem, size = 0x12000, scoped, tag = 'internal scratch']
  %s0 = inlined_call_operand.vmem [shape: f32[16,3], index: 0, kind: input, shape index: {}]
  %s1 = inlined_call_operand.vmem [shape: f32[3,128], index: 1, kind: input, shape index: {}]
  %s2 = inlined_call_operand.hbm [shape: f32[16,128], index: 2, kind: output, shape index: {}]
  %s3 = sld [smem:[#allocation0]]
  $region41: #{tpu_custom_call.1} parent=0
    _
  %s5 = ssub.s32 1, %s3
  %s6 = scalar_select 0, %s5, %s3
  $region1: #{tpu_custom_call.1} parent=0
    #allocation2 [shape = 'u8[8192]{0}', space=vmem, size = 0x2000, scoped, tag = 'output window, operand 0']
    #allocation3 [shape = 's32[2]{0}', space=sflag, size = 0x8, scoped, tag = 'scoped memory for tpu_custom_call.1']
    %7 = vsyncpa [#allocation3], 0
    %s8 = scalar_lea.sflag [#allocation3], 1
    %9 = vsyncpa %s8, 0
    loop: start=0, step=1, limit=4
    $region2: #{tpu_custom_call.1} parent=1 // loop_pre_header
      _
    $region3: #{tpu_custom_call.1} parent=1 // loop_header
      %s11 = sphi 0, %s15
      %p12 = scmp.ge.s32.totalorder %s11, 4
      %s21 = sphi 0, %s23
      %s24 = sphi 0, %s21
      %s25 = sphi 0, %s24
      %s41 = sphi 0, %s25
      %s45 = sphi 0, %s45
      %s47 = sphi 0, %s45
      %s48 = sphi 0, %s47
      %s62 = sphi 0, %s48
      %s68 = sphi 0, %s70
      %s71 = sphi 0, %s68
      %s72 = sphi 0, %s71
      %s88 = sphi 0, %s72
    $region4: #{tpu_custom_call.1} parent=1 // loop_header_branch
      %14 = sbr.rel (%p12) target = $region8
    $region5: #{tpu_custom_call.1} parent=1 // loop_body
      %s16 = ssub.s32 %s11, 1
      %s17 = ssub.s32 %s11, 2
      %s18 = sadd.s32 %s11, 1
      %s19 = ssub.s32 %s11, %s18
      %p20 = scmp.eq.s32.totalorder %s19, 0
      %s22 = sadd.s32 %s21, 1
      %s23 = scalar_select %p20, %s21, %s22
      %p26 = pneg %p20
      %p27 = scmp.eq.s32.totalorder %s11, 1
      %p28 = por %p26, %p27
      %p29 = scmp.ne.s32.totalorder %s21, %s24
      %p30 = scmp.eq.s32.totalorder %s11, 0
      %p31 = por %p29, %p30
      %p32 = scmp.ne.s32.totalorder %s21, %s24
      %p33 = scmp.eq.s32.totalorder %s16, 1
      %p34 = por %p32, %p33
      %p35 = scmp.ne.s32.totalorder %s24, %s25
      %p36 = scmp.eq.s32.totalorder %s16, 0
      %p37 = por %p35, %p36
      %p38 = scmp.ne.s32.totalorder %s24, %s25
      %p39 = scmp.eq.s32.totalorder %s17, 1
      %p40 = por %p38, %p39
      %p42 = scmp.ne.s32.totalorder %s25, %s41
      %p43 = scmp.eq.s32.totalorder %s17, 0
      %p44 = por %p42, %p43
      %s46 = sadd.s32 %s45, 1
      %p49 = scmp.eq.s32.totalorder %s11, 1
      %p50 = scmp.ne.s32.totalorder %s45, %s47
      %p51 = scmp.eq.s32.totalorder %s11, 0
      %p52 = por %p50, %p51
      %p53 = scmp.ne.s32.totalorder %s45, %s47
      %p54 = scmp.eq.s32.totalorder %s16, 1
      %p55 = por %p53, %p54
      %p56 = scmp.ne.s32.totalorder %s47, %s48
      %p57 = scmp.eq.s32.totalorder %s16, 0
      %p58 = por %p56, %p57
      %p59 = scmp.ne.s32.totalorder %s47, %s48
      %p60 = scmp.eq.s32.totalorder %s17, 1
      %p61 = por %p59, %p60
      %p63 = scmp.ne.s32.totalorder %s48, %s62
      %p64 = scmp.eq.s32.totalorder %s17, 0
      %p65 = por %p63, %p64
      %s66 = ssub.s32 %s11, %s18
      %p67 = scmp.eq.s32.totalorder %s66, 0
      %s69 = sadd.s32 %s68, 1
      %s70 = scalar_select %p67, %s68, %s69
      %p73 = pneg %p67
      %p74 = scmp.eq.s32.totalorder %s11, 1
      %p75 = por %p73, %p74
      %p76 = scmp.ne.s32.totalorder %s68, %s71
      %p77 = scmp.eq.s32.totalorder %s11, 0
      %p78 = por %p76, %p77
      %p79 = scmp.ne.s32.totalorder %s68, %s71
      %p80 = scmp.eq.s32.totalorder %s16, 1
      %p81 = por %p79, %p80
      %p82 = scmp.ne.s32.totalorder %s71, %s72
      %p83 = scmp.eq.s32.totalorder %s16, 0
      %p84 = por %p82, %p83
      %p85 = scmp.ne.s32.totalorder %s71, %s72
      %p86 = scmp.eq.s32.totalorder %s17, 1
      %p87 = por %p85, %p86
      %p89 = scmp.ne.s32.totalorder %s72, %s88
      %p90 = scmp.eq.s32.totalorder %s17, 0
      %p91 = por %p89, %p90
      %p92 = scmp.le.s32.totalorder 1, %s11
      %p93 = scmp.lt.s32.totalorder %s11, 3
      %p94 = pnand %p92, %p93
      %p95 = pneg %p94
      // Predicated region
      $region9: #{tpu_custom_call.1} parent=5 // pred_check
        _
      $region10: #{tpu_custom_call.1} parent=5 // pred_check_branch
        %97 = sbr.rel (%p94) target = $region12
      $region11: #{tpu_custom_call.1} parent=5 // pred_region
        %s98 = ssub.s32 %s11, 1
        // Predicated region
        $region13: #{tpu_custom_call.1} parent=11 // pred_check
          %p99 = pneg %p58
        $region14: #{tpu_custom_call.1} parent=11 // pred_check_branch
          %101 = sbr.rel (%p99) target = $region16
        $region15: #{tpu_custom_call.1} parent=11 // pred_region
          _
        $region16: #{tpu_custom_call.1} parent=11 // pred_fallthru
          _
      $region12: #{tpu_custom_call.1} parent=5 // pred_fallthru
        _
      %p102 = scmp.lt.s32.totalorder %s11, 2
      // Predicated region
      $region17: #{tpu_custom_call.1} parent=5 // pred_check
        %p103 = pneg %p102
      $region18: #{tpu_custom_call.1} parent=5 // pred_check_branch
        %105 = sbr.rel (%p103) target = $region20
      $region19: #{tpu_custom_call.1} parent=5 // pred_region
        // Predicated region
        $region21: #{tpu_custom_call.1} parent=19 // pred_check
          %p106 = pneg %p31
        $region22: #{tpu_custom_call.1} parent=19 // pred_check_branch
          %108 = sbr.rel (%p106) target = $region24
        $region23: #{tpu_custom_call.1} parent=19 // pred_region
          %p109 = scmp.lt.s32.totalorder %s11, 1
          %s110 = scalar_select %p109, %s11, 1
          %s111 = smul.addr %s110, 8
          %s112 = scalar_lea.vmem %s0, %s111
        $region24: #{tpu_custom_call.1} parent=19 // pred_fallthru
          _
      $region20: #{tpu_custom_call.1} parent=5 // pred_fallthru
        _
      %p113 = scmp.le.s32.totalorder 1, %s11
      %p114 = scmp.lt.s32.totalorder %s11, 3
      %p115 = pnand %p113, %p114
      %p116 = pneg %p115
      // Predicated region
      $region25: #{tpu_custom_call.1} parent=5 // pred_check
        _
      $region26: #{tpu_custom_call.1} parent=5 // pred_check_branch
        %118 = sbr.rel (%p115) target = $region28
      $region27: #{tpu_custom_call.1} parent=5 // pred_region
        %s119 = ssub.s32 %s11, 1
        %p120 = scmp.lt.s32.totalorder %s16, 1
        %s121 = scalar_select %p120, %s16, 1
        %s122 = smul.addr %s121, 8
        %s123 = scalar_lea.vmem %s0, %s122
        %p124 = pneg %p37
        %p125 = pneg %p34
        %p126 = pneg %p58
        %p127 = pneg %p55
        %p128 = pneg %p84
        %p129 = pneg %p81
        %s130 = sand.u32 %s71, 1
        %s131 = scalar_lea.sflag [#allocation3], %s130
        %s132 = sand.u32 %s71, 1
        %s133 = smul.addr %s132, 8
        %s134 = scalar_lea.vmem [#allocation2], %s133
        %p135 = scmp.lt.s32.totalorder %s16, 1
        %s136 = scalar_select %p135, %s16, 1
        %s137 = smul.addr %s136, 8
        %s138 = scalar_lea.vmem %s0, %s137
        %v139 = vld [vmem:[%s138] sm:$0xff]
        %v140 = vld [vmem:[%s1] sm:$0x7]
        %vm141 = vcmask 23552
        %v143 = vsel %vm141, %v139, 0
        %vm145 = vcmask 1042432
        %v147 = vsel %vm145, %v140, 0
        %149 = vmatprep.subr.mxu0 0.0
        %150 = vmatpush1.msra.mxu0 0.0
        %151 = vmatprep.subr.mxu0 0.0
        %152 = vmatpush1.msra.mxu0 0.0
        %153 = vmatprep.subr.mxu0 0.0
        %154 = vmatpush1.msra.mxu0 0.0
        %155 = vmatprep.subr.mxu0 0.0
        %156 = vmatpush1.msra.mxu0 0.0
        %157 = vmatprep.subr.mxu0 0.0
        %158 = vmatpush1.msra.mxu0 0.0
        %159 = vmatprep.subr.mxu0 0.0
        %160 = vmatpush1.msra.mxu0 0.0
        %161 = vmatprep.subr.mxu0 0.0
        %162 = vmatpush1.msra.mxu0 0.0
        %163 = vmatprep.subr.mxu0 0.0
        %164 = vmatpush1.msra.mxu0 0.0
        %165 = vmatprep.subr.mxu0 0.0
        %166 = vmatpush1.msra.mxu0 0.0
        %167 = vmatprep.subr.mxu0 0.0
        %168 = vmatpush1.msra.mxu0 0.0
        %169 = vmatprep.subr.mxu0 0.0
        %170 = vmatpush1.msra.mxu0 0.0
        %171 = vmatprep.subr.mxu0 0.0
        %172 = vmatpush1.msra.mxu0 0.0
        %173 = vmatprep.subr.mxu0 0.0
        %174 = vmatpush1.msra.mxu0 0.0
        %175 = vmatprep.subr.mxu0 0.0
        %176 = vmatpush1.msra.mxu0 0.0
        %177 = vmatprep.subr.mxu0 0.0
        %178 = vmatpush1.msra.mxu0 0.0
        %179 = vmatprep.subr.mxu0 0.0
        %v180 = vand.u32 %v147, 4294901760
        %181 = vmatpush1.msra.mxu0 %v180
        %182 = vmatprep.subr.mxu0 0.0
        %183 = vmatpush2.msra.mxu0 0.0
        %184 = vmatprep.subr.mxu0 0.0
        %185 = vmatpush2.msra.mxu0 0.0
        %186 = vmatprep.subr.mxu0 0.0
        %187 = vmatpush2.msra.mxu0 0.0
        %188 = vmatprep.subr.mxu0 0.0
        %189 = vmatpush2.msra.mxu0 0.0
        %190 = vmatprep.subr.mxu0 0.0
        %191 = vmatpush2.msra.mxu0 0.0
        %192 = vmatprep.subr.mxu0 0.0
        %193 = vmatpush2.msra.mxu0 0.0
        %194 = vmatprep.subr.mxu0 0.0
        %195 = vmatpush2.msra.mxu0 0.0
        %196 = vmatprep.subr.mxu0 0.0
        %197 = vmatpush2.msra.mxu0 0.0
        %198 = vmatprep.subr.mxu0 0.0
        %199 = vmatpush2.msra.mxu0 0.0
        %200 = vmatprep.subr.mxu0 0.0
        %201 = vmatpush2.msra.mxu0 0.0
        %202 = vmatprep.subr.mxu0 0.0
        %203 = vmatpush2.msra.mxu0 0.0
        %204 = vmatprep.subr.mxu0 0.0
        %205 = vmatpush2.msra.mxu0 0.0
        %206 = vmatprep.subr.mxu0 0.0
        %207 = vmatpush2.msra.mxu0 0.0
        %208 = vmatprep.subr.mxu0 0.0
        %209 = vmatpush2.msra.mxu0 0.0
        %210 = vmatprep.subr.mxu0 0.0
        %211 = vmatpush2.msra.mxu0 0.0
        %212 = vmatprep.subr.mxu0 0.0
        %213 = vmatpush2.msra.mxu0 0.0
        %214 = vmatprep.mubr.f32.mxu0 0.0
        %v215 = vand.u32 %v143, 4294901760
        %v216 = vsub.f32 %v143, %v215
        %v217 = vand.u32 %v216, 4294901760
        %v218 = vsub.f32 %v216, %v217
        %v219 = vand.u32 %v218, 4294901760
        %220 = vmatmul.mubr.f32.gmra.mxu0 %v219
        %v221 = vpop.f32.mrf.mxu0
        %v222 = vadd.f32 0.0, %v221
        %v223 = vpop.f32.mrf.mxu0
        %224 = vdwg.mxu0
        %225 = vmatprep.subr.mxu0 0.0
        %226 = vmatpush1.msra.mxu0 0.0
        %227 = vmatprep.subr.mxu0 0.0
        %228 = vmatpush1.msra.mxu0 0.0
        %229 = vmatprep.subr.mxu0 0.0
        %230 = vmatpush1.msra.mxu0 0.0
        %231 = vmatprep.subr.mxu0 0.0
        %232 = vmatpush1.msra.mxu0 0.0
        %233 = vmatprep.subr.mxu0 0.0
        %234 = vmatpush1.msra.mxu0 0.0
        %235 = vmatprep.subr.mxu0 0.0
        %236 = vmatpush1.msra.mxu0 0.0
        %237 = vmatprep.subr.mxu0 0.0
        %238 = vmatpush1.msra.mxu0 0.0
        %239 = vmatprep.subr.mxu0 0.0
        %240 = vmatpush1.msra.mxu0 0.0
        %241 = vmatprep.subr.mxu0 0.0
        %242 = vmatpush1.msra.mxu0 0.0
        %243 = vmatprep.subr.mxu0 0.0
        %244 = vmatpush1.msra.mxu0 0.0
        %245 = vmatprep.subr.mxu0 0.0
        %246 = vmatpush1.msra.mxu0 0.0
        %247 = vmatprep.subr.mxu0 0.0
        %248 = vmatpush1.msra.mxu0 0.0
        %249 = vmatprep.subr.mxu0 0.0
        %250 = vmatpush1.msra.mxu0 0.0
        %251 = vmatprep.subr.mxu0 0.0
        %252 = vmatpush1.msra.mxu0 0.0
        %253 = vmatprep.subr.mxu0 0.0
        %254 = vmatpush1.msra.mxu0 0.0
        %255 = vmatprep.subr.mxu0 0.0
        %v256 = vand.u32 %v147, 4294901760
        %v257 = vsub.f32 %v147, %v256
        %v258 = vand.u32 %v257, 4294901760
        %v259 = vsub.f32 %v257, %v258
        %v260 = vand.u32 %v259, 4294901760
        %261 = vmatpush1.msra.mxu0 %v260
        %262 = vmatprep.subr.mxu0 0.0
        %263 = vmatpush2.msra.mxu0 0.0
        %264 = vmatprep.subr.mxu0 0.0
        %265 = vmatpush2.msra.mxu0 0.0
        %266 = vmatprep.subr.mxu0 0.0
        %267 = vmatpush2.msra.mxu0 0.0
        %268 = vmatprep.subr.mxu0 0.0
        %269 = vmatpush2.msra.mxu0 0.0
        %270 = vmatprep.subr.mxu0 0.0
        %271 = vmatpush2.msra.mxu0 0.0
        %272 = vmatprep.subr.mxu0 0.0
        %273 = vmatpush2.msra.mxu0 0.0
        %274 = vmatprep.subr.mxu0 0.0
        %275 = vmatpush2.msra.mxu0 0.0
        %276 = vmatprep.subr.mxu0 0.0
        %277 = vmatpush2.msra.mxu0 0.0
        %278 = vmatprep.subr.mxu0 0.0
        %279 = vmatpush2.msra.mxu0 0.0
        %280 = vmatprep.subr.mxu0 0.0
        %281 = vmatpush2.msra.mxu0 0.0
        %282 = vmatprep.subr.mxu0 0.0
        %283 = vmatpush2.msra.mxu0 0.0
        %284 = vmatprep.subr.mxu0 0.0
        %285 = vmatpush2.msra.mxu0 0.0
        %286 = vmatprep.subr.mxu0 0.0
        %287 = vmatpush2.msra.mxu0 0.0
        %288 = vmatprep.subr.mxu0 0.0
        %289 = vmatpush2.msra.mxu0 0.0
        %290 = vmatprep.subr.mxu0 0.0
        %291 = vmatpush2.msra.mxu0 0.0
        %292 = vmatprep.subr.mxu0 0.0
        %293 = vmatpush2.msra.mxu0 0.0
        %294 = vmatprep.mubr.f32.mxu0 0.0
        %v295 = vand.u32 %v143, 4294901760
        %296 = vmatmul.mubr.f32.gmra.mxu0 %v295
        %v297 = vpop.f32.mrf.mxu0
        %v298 = vadd.f32 %v222, %v297
        %v299 = vpop.f32.mrf.mxu0
        %300 = vdwg.mxu0
        %301 = vmatprep.subr.mxu0 0.0
        %302 = vmatpush1.msra.mxu0 0.0
        %303 = vmatprep.subr.mxu0 0.0
        %304 = vmatpush1.msra.mxu0 0.0
        %305 = vmatprep.subr.mxu0 0.0
        %306 = vmatpush1.msra.mxu0 0.0
        %307 = vmatprep.subr.mxu0 0.0
        %308 = vmatpush1.msra.mxu0 0.0
        %309 = vmatprep.subr.mxu0 0.0
        %310 = vmatpush1.msra.mxu0 0.0
        %311 = vmatprep.subr.mxu0 0.0
        %312 = vmatpush1.msra.mxu0 0.0
        %313 = vmatprep.subr.mxu0 0.0
        %314 = vmatpush1.msra.mxu0 0.0
        %315 = vmatprep.subr.mxu0 0.0
        %316 = vmatpush1.msra.mxu0 0.0
        %317 = vmatprep.subr.mxu0 0.0
        %318 = vmatpush1.msra.mxu0 0.0
        %319 = vmatprep.subr.mxu0 0.0
        %320 = vmatpush1.msra.mxu0 0.0
        %321 = vmatprep.subr.mxu0 0.0
        %322 = vmatpush1.msra.mxu0 0.0
        %323 = vmatprep.subr.mxu0 0.0
        %324 = vmatpush1.msra.mxu0 0.0
        %325 = vmatprep.subr.mxu0 0.0
        %326 = vmatpush1.msra.mxu0 0.0
        %327 = vmatprep.subr.mxu0 0.0
        %328 = vmatpush1.msra.mxu0 0.0
        %329 = vmatprep.subr.mxu0 0.0
        %330 = vmatpush1.msra.mxu0 0.0
        %331 = vmatprep.subr.mxu0 0.0
        %v332 = vand.u32 %v147, 4294901760
        %v333 = vsub.f32 %v147, %v332
        %334 = vmatpush1.msra.mxu0 %v333
        %335 = vmatprep.subr.mxu0 0.0
        %336 = vmatpush2.msra.mxu0 0.0
        %337 = vmatprep.subr.mxu0 0.0
        %338 = vmatpush2.msra.mxu0 0.0
        %339 = vmatprep.subr.mxu0 0.0
        %340 = vmatpush2.msra.mxu0 0.0
        %341 = vmatprep.subr.mxu0 0.0
        %342 = vmatpush2.msra.mxu0 0.0
        %343 = vmatprep.subr.mxu0 0.0
        %344 = vmatpush2.msra.mxu0 0.0
        %345 = vmatprep.subr.mxu0 0.0
        %346 = vmatpush2.msra.mxu0 0.0
        %347 = vmatprep.subr.mxu0 0.0
        %348 = vmatpush2.msra.mxu0 0.0
        %349 = vmatprep.subr.mxu0 0.0
        %350 = vmatpush2.msra.mxu0 0.0
        %351 = vmatprep.subr.mxu0 0.0
        %352 = vmatpush2.msra.mxu0 0.0
        %353 = vmatprep.subr.mxu0 0.0
        %354 = vmatpush2.msra.mxu0 0.0
        %355 = vmatprep.subr.mxu0 0.0
        %356 = vmatpush2.msra.mxu0 0.0
        %357 = vmatprep.subr.mxu0 0.0
        %358 = vmatpush2.msra.mxu0 0.0
        %359 = vmatprep.subr.mxu0 0.0
        %360 = vmatpush2.msra.mxu0 0.0
        %361 = vmatprep.subr.mxu0 0.0
        %362 = vmatpush2.msra.mxu0 0.0
        %363 = vmatprep.subr.mxu0 0.0
        %364 = vmatpush2.msra.mxu0 0.0
        %365 = vmatprep.subr.mxu0 0.0
        %366 = vmatpush2.msra.mxu0 0.0
        %367 = vmatprep.mubr.f32.mxu0 0.0
        %v368 = vand.u32 %v143, 4294901760
        %v369 = vsub.f32 %v143, %v368
        %370 = vmatmul.mubr.f32.gmra.mxu0 %v369
        %v371 = vpop.f32.mrf.mxu0
        %v372 = vadd.f32 %v298, %v371
        %v373 = vpop.f32.mrf.mxu0
        %374 = vdwg.mxu0
        %375 = vmatprep.subr.mxu0 0.0
        %376 = vmatpush1.msra.mxu0 0.0
        %377 = vmatprep.subr.mxu0 0.0
        %378 = vmatpush1.msra.mxu0 0.0
        %379 = vmatprep.subr.mxu0 0.0
        %380 = vmatpush1.msra.mxu0 0.0
        %381 = vmatprep.subr.mxu0 0.0
        %382 = vmatpush1.msra.mxu0 0.0
        %383 = vmatprep.subr.mxu0 0.0
        %384 = vmatpush1.msra.mxu0 0.0
        %385 = vmatprep.subr.mxu0 0.0
        %386 = vmatpush1.msra.mxu0 0.0
        %387 = vmatprep.subr.mxu0 0.0
        %388 = vmatpush1.msra.mxu0 0.0
        %389 = vmatprep.subr.mxu0 0.0
        %390 = vmatpush1.msra.mxu0 0.0
        %391 = vmatprep.subr.mxu0 0.0
        %392 = vmatpush1.msra.mxu0 0.0
        %393 = vmatprep.subr.mxu0 0.0
        %394 = vmatpush1.msra.mxu0 0.0
        %395 = vmatprep.subr.mxu0 0.0
        %396 = vmatpush1.msra.mxu0 0.0
        %397 = vmatprep.subr.mxu0 0.0
        %398 = vmatpush1.msra.mxu0 0.0
        %399 = vmatprep.subr.mxu0 0.0
        %400 = vmatpush1.msra.mxu0 0.0
        %401 = vmatprep.subr.mxu0 0.0
        %402 = vmatpush1.msra.mxu0 0.0
        %403 = vmatprep.subr.mxu0 0.0
        %404 = vmatpush1.msra.mxu0 0.0
        %405 = vmatprep.subr.mxu0 0.0
        %v406 = vand.u32 %v147, 4294901760
        %407 = vmatpush1.msra.mxu0 %v406
        %408 = vmatprep.subr.mxu0 0.0
        %409 = vmatpush2.msra.mxu0 0.0
        %410 = vmatprep.subr.mxu0 0.0
        %411 = vmatpush2.msra.mxu0 0.0
        %412 = vmatprep.subr.mxu0 0.0
        %413 = vmatpush2.msra.mxu0 0.0
        %414 = vmatprep.subr.mxu0 0.0
        %415 = vmatpush2.msra.mxu0 0.0
        %416 = vmatprep.subr.mxu0 0.0
        %417 = vmatpush2.msra.mxu0 0.0
        %418 = vmatprep.subr.mxu0 0.0
        %419 = vmatpush2.msra.mxu0 0.0
        %420 = vmatprep.subr.mxu0 0.0
        %421 = vmatpush2.msra.mxu0 0.0
        %422 = vmatprep.subr.mxu0 0.0
        %423 = vmatpush2.msra.mxu0 0.0
        %424 = vmatprep.subr.mxu0 0.0
        %425 = vmatpush2.msra.mxu0 0.0
        %426 = vmatprep.subr.mxu0 0.0
        %427 = vmatpush2.msra.mxu0 0.0
        %428 = vmatprep.subr.mxu0 0.0
        %429 = vmatpush2.msra.mxu0 0.0
        %430 = vmatprep.subr.mxu0 0.0
        %431 = vmatpush2.msra.mxu0 0.0
        %432 = vmatprep.subr.mxu0 0.0
        %433 = vmatpush2.msra.mxu0 0.0
        %434 = vmatprep.subr.mxu0 0.0
        %435 = vmatpush2.msra.mxu0 0.0
        %436 = vmatprep.subr.mxu0 0.0
        %437 = vmatpush2.msra.mxu0 0.0
        %438 = vmatprep.subr.mxu0 0.0
        %439 = vmatpush2.msra.mxu0 0.0
        %440 = vmatprep.mubr.f32.mxu0 0.0
        %v441 = vand.u32 %v143, 4294901760
        %v442 = vsub.f32 %v143, %v441
        %v443 = vand.u32 %v442, 4294901760
        %444 = vmatmul.mubr.f32.gmra.mxu0 %v443
        %v445 = vpop.f32.mrf.mxu0
        %v446 = vadd.f32 %v372, %v445
        %v447 = vpop.f32.mrf.mxu0
        %448 = vdwg.mxu0
        %449 = vmatprep.subr.mxu0 0.0
        %450 = vmatpush1.msra.mxu0 0.0
        %451 = vmatprep.subr.mxu0 0.0
        %452 = vmatpush1.msra.mxu0 0.0
        %453 = vmatprep.subr.mxu0 0.0
        %454 = vmatpush1.msra.mxu0 0.0
        %455 = vmatprep.subr.mxu0 0.0
        %456 = vmatpush1.msra.mxu0 0.0
        %457 = vmatprep.subr.mxu0 0.0
        %458 = vmatpush1.msra.mxu0 0.0
        %459 = vmatprep.subr.mxu0 0.0
        %460 = vmatpush1.msra.mxu0 0.0
        %461 = vmatprep.subr.mxu0 0.0
        %462 = vmatpush1.msra.mxu0 0.0
        %463 = vmatprep.subr.mxu0 0.0
        %464 = vmatpush1.msra.mxu0 0.0
        %465 = vmatprep.subr.mxu0 0.0
        %466 = vmatpush1.msra.mxu0 0.0
        %467 = vmatprep.subr.mxu0 0.0
        %468 = vmatpush1.msra.mxu0 0.0
        %469 = vmatprep.subr.mxu0 0.0
        %470 = vmatpush1.msra.mxu0 0.0
        %471 = vmatprep.subr.mxu0 0.0
        %472 = vmatpush1.msra.mxu0 0.0
        %473 = vmatprep.subr.mxu0 0.0
        %474 = vmatpush1.msra.mxu0 0.0
        %475 = vmatprep.subr.mxu0 0.0
        %476 = vmatpush1.msra.mxu0 0.0
        %477 = vmatprep.subr.mxu0 0.0
        %478 = vmatpush1.msra.mxu0 0.0
        %479 = vmatprep.subr.mxu0 0.0
        %v480 = vand.u32 %v147, 4294901760
        %v481 = vsub.f32 %v147, %v480
        %v482 = vand.u32 %v481, 4294901760
        %483 = vmatpush1.msra.mxu0 %v482
        %484 = vmatprep.subr.mxu0 0.0
        %485 = vmatpush2.msra.mxu0 0.0
        %486 = vmatprep.subr.mxu0 0.0
        %487 = vmatpush2.msra.mxu0 0.0
        %488 = vmatprep.subr.mxu0 0.0
        %489 = vmatpush2.msra.mxu0 0.0
        %490 = vmatprep.subr.mxu0 0.0
        %491 = vmatpush2.msra.mxu0 0.0
        %492 = vmatprep.subr.mxu0 0.0
        %493 = vmatpush2.msra.mxu0 0.0
        %494 = vmatprep.subr.mxu0 0.0
        %495 = vmatpush2.msra.mxu0 0.0
        %496 = vmatprep.subr.mxu0 0.0
        %497 = vmatpush2.msra.mxu0 0.0
        %498 = vmatprep.subr.mxu0 0.0
        %499 = vmatpush2.msra.mxu0 0.0
        %500 = vmatprep.subr.mxu0 0.0
        %501 = vmatpush2.msra.mxu0 0.0
        %502 = vmatprep.subr.mxu0 0.0
        %503 = vmatpush2.msra.mxu0 0.0
        %504 = vmatprep.subr.mxu0 0.0
        %505 = vmatpush2.msra.mxu0 0.0
        %506 = vmatprep.subr.mxu0 0.0
        %507 = vmatpush2.msra.mxu0 0.0
        %508 = vmatprep.subr.mxu0 0.0
        %509 = vmatpush2.msra.mxu0 0.0
        %510 = vmatprep.subr.mxu0 0.0
        %511 = vmatpush2.msra.mxu0 0.0
        %512 = vmatprep.subr.mxu0 0.0
        %513 = vmatpush2.msra.mxu0 0.0
        %514 = vmatprep.subr.mxu0 0.0
        %515 = vmatpush2.msra.mxu0 0.0
        %516 = vmatprep.mubr.f32.mxu0 0.0
        %v517 = vand.u32 %v143, 4294901760
        %518 = vmatmul.mubr.f32.gmra.mxu0 %v517
        %v519 = vpop.f32.mrf.mxu0
        %v520 = vadd.f32 %v446, %v519
        %v521 = vpop.f32.mrf.mxu0
        %522 = vdwg.mxu0
        %523 = vmatprep.subr.mxu0 0.0
        %524 = vmatpush1.msra.mxu0 0.0
        %525 = vmatprep.subr.mxu0 0.0
        %526 = vmatpush1.msra.mxu0 0.0
        %527 = vmatprep.subr.mxu0 0.0
        %528 = vmatpush1.msra.mxu0 0.0
        %529 = vmatprep.subr.mxu0 0.0
        %530 = vmatpush1.msra.mxu0 0.0
        %531 = vmatprep.subr.mxu0 0.0
        %532 = vmatpush1.msra.mxu0 0.0
        %533 = vmatprep.subr.mxu0 0.0
        %534 = vmatpush1.msra.mxu0 0.0
        %535 = vmatprep.subr.mxu0 0.0
        %536 = vmatpush1.msra.mxu0 0.0
        %537 = vmatprep.subr.mxu0 0.0
        %538 = vmatpush1.msra.mxu0 0.0
        %539 = vmatprep.subr.mxu0 0.0
        %540 = vmatpush1.msra.mxu0 0.0
        %541 = vmatprep.subr.mxu0 0.0
        %542 = vmatpush1.msra.mxu0 0.0
        %543 = vmatprep.subr.mxu0 0.0
        %544 = vmatpush1.msra.mxu0 0.0
        %545 = vmatprep.subr.mxu0 0.0
        %546 = vmatpush1.msra.mxu0 0.0
        %547 = vmatprep.subr.mxu0 0.0
        %548 = vmatpush1.msra.mxu0 0.0
        %549 = vmatprep.subr.mxu0 0.0
        %550 = vmatpush1.msra.mxu0 0.0
        %551 = vmatprep.subr.mxu0 0.0
        %552 = vmatpush1.msra.mxu0 0.0
        %553 = vmatprep.subr.mxu0 0.0
        %v554 = vand.u32 %v147, 4294901760
        %555 = vmatpush1.msra.mxu0 %v554
        %556 = vmatprep.subr.mxu0 0.0
        %557 = vmatpush2.msra.mxu0 0.0
        %558 = vmatprep.subr.mxu0 0.0
        %559 = vmatpush2.msra.mxu0 0.0
        %560 = vmatprep.subr.mxu0 0.0
        %561 = vmatpush2.msra.mxu0 0.0
        %562 = vmatprep.subr.mxu0 0.0
        %563 = vmatpush2.msra.mxu0 0.0
        %564 = vmatprep.subr.mxu0 0.0
        %565 = vmatpush2.msra.mxu0 0.0
        %566 = vmatprep.subr.mxu0 0.0
        %567 = vmatpush2.msra.mxu0 0.0
        %568 = vmatprep.subr.mxu0 0.0
        %569 = vmatpush2.msra.mxu0 0.0
        %570 = vmatprep.subr.mxu0 0.0
        %571 = vmatpush2.msra.mxu0 0.0
        %572 = vmatprep.subr.mxu0 0.0
        %573 = vmatpush2.msra.mxu0 0.0
        %574 = vmatprep.subr.mxu0 0.0
        %575 = vmatpush2.msra.mxu0 0.0
        %576 = vmatprep.subr.mxu0 0.0
        %577 = vmatpush2.msra.mxu0 0.0
        %578 = vmatprep.subr.mxu0 0.0
        %579 = vmatpush2.msra.mxu0 0.0
        %580 = vmatprep.subr.mxu0 0.0
        %581 = vmatpush2.msra.mxu0 0.0
        %582 = vmatprep.subr.mxu0 0.0
        %583 = vmatpush2.msra.mxu0 0.0
        %584 = vmatprep.subr.mxu0 0.0
        %585 = vmatpush2.msra.mxu0 0.0
        %586 = vmatprep.subr.mxu0 0.0
        %587 = vmatpush2.msra.mxu0 0.0
        %588 = vmatprep.mubr.f32.mxu0 0.0
        %v589 = vand.u32 %v143, 4294901760
        %590 = vmatmul.mubr.f32.gmra.mxu0 %v589
        %v591 = vpop.f32.mrf.mxu0
        %v592 = vadd.f32 %v520, %v591
        %v593 = vpop.f32.mrf.mxu0
        %594 = vdwg.mxu0
        %v595 = vand.u32 2147483647, %v592
        %vm596 = vcmp.le.f32.partialorder %v595, 0.7853982
        %vm597 = vcmp.lt.s32.totalorder %v592, 0
        %v598 = vand.u32 %v592, 2139095040
        %v599 = vshrl.u32 %v598, 23
        %v600 = vsub.s32 %v599, 127
        %v601 = vand.u32 2147483647, %v592
        %v602 = vand.u32 %v601, 8388607
        %v603 = vor.u32 %v602, 8388608
        %v604 = vsub.s32 0, %v603
        %v605 = vadd.s32 %v600, 1
        %vm606 = vcmp.gt.s32.totalorder %v605, 0
        %v607 = vsel %vm606, %v605, 0
        %v608 = vshrl.u32 %v607, 5
        %v609 = vand.u32 %v607, 31
        %v610 = vsub.s32 32, %v609
        %v611 = vshrl.u32 683565275, %v610
        %v612 = vshll.u32 683565275, %v609
        %v613 = vshrl.u32 2475754826, %v610
        %v614 = vor.u32 %v612, %v613
        %v615 = vshll.u32 2475754826, %v609
        %v616 = vshrl.u32 2131351028, %v610
        %v617 = vor.u32 %v615, %v616
        %v618 = vshll.u32 2131351028, %v609
        %v619 = vshrl.u32 2102212464, %v610
        %v620 = vor.u32 %v618, %v619
        %v621 = vshll.u32 2102212464, %v609
        %v622 = vshrl.u32 920167782, %v610
        %v623 = vor.u32 %v621, %v622
        %v624 = vshll.u32 920167782, %v609
        %v625 = vshrl.u32 1326507024, %v610
        %v626 = vor.u32 %v624, %v625
        %vm627 = vcmp.lt.s32.totalorder %v608, 1
        %vm628 = vcmp.lt.s32.totalorder %v608, 2
        %vm629 = vcmp.lt.s32.totalorder %v608, 3
        %vm630 = vcmp.lt.s32.totalorder %v608, 4
        %v631 = vsel %vm627, %v611, %v614
        %v632 = vsel %vm630, %v620, 2102212464
        %v633 = vsel %vm629, %v617, %v632
        %v634 = vsel %vm628, %v631, %v633
        %v635 = vsel %vm627, %v614, %v617
        %v636 = vsel %vm630, %v623, 920167782
        %v637 = vsel %vm629, %v620, %v636
        %v638 = vsel %vm628, %v635, %v637
        %v639 = vsel %vm627, %v617, %v620
        %v640 = vsel %vm630, %v626, 1326507024
        %v641 = vsel %vm629, %v623, %v640
        %v642 = vsel %vm628, %v639, %v641
        %v643 = vshll.u32 %v603, 8
        %v644 = vmul.u32.u64.compose %v643, %v642
        %v645 = vextract.low.u32 %v644
        %v646 = vextract.high.u32 %v644
        %v647 = vmul.u32.u64.compose %v643, %v638
        %v648 = vextract.low.u32 %v647
        %v649 = vextract.high.u32 %v647
        %v650 = vmul.u32 %v643, %v634
        %v651 = vadd.s32 %v646, %v648
        %vm652 = vc.u32 %v646, %v648
        %v653 = vadd.s32 %v649, 1
        %v654 = vsel %vm652, %v653, %v649
        %v655 = vadd.s32 %v650, %v654
        %v656 = vadd.s32 %v655, 536870912
        %v657 = vshrl.u32 %v656, 30
        %v658 = vshll.u32 %v657, 30
        %v659 = vsub.s32 %v655, %v658
        %vm660 = vcmp.lt.s32.totalorder %v659, 0
        %v661 = vsub.s32 0, %v659
        %v662 = vsel %vm660, %v661, %v659
        %v663 = vclz %v662
        %v664 = vsub.s32 %v663, 2
        %vm665 = vcmp.gt.s32.totalorder 0, %v664
        %v666 = vsel %vm665, 0, %v664
        %v667 = vsub.s32 32, %v666
        %v668 = vshll.u32 %v659, %v666
        %v669 = vshrl.u32 %v651, %v667
        %v670 = vor.u32 %v668, %v669
        %v671 = vsub.s32 4294967266, %v666
        %v672 = vadd.s32 %v671, 127
        %v673 = vshll.u32 %v672, 23
        %v674 = vor.u32 4788187, %v673
        %v675 = vand.u32 2147483647, %v674
        %v677 = vcvt.s32.f32 %v670
        %v678 = vmul.f32 %v677, %v675
        %v679 = vxor.u32 %v678, 2147483648
        %v680 = vsel %vm597, %v679, %v678
        %v681 = vsub.s32 4, %v657
        %v682 = vsel %vm597, %v681, %v657
        %v683 = vsel %vm596, %v592, %v680
        %v684 = vsel %vm596, 0, %v682
        %v685 = vcosq.f32.pop %v683
        %v686 = vsinq.f32.pop %v683
        %vm687 = vweird.f32 %v592
        %v688 = vadd.s32 %v684, 3
        %v689 = vand.u32 %v688, 3
        %vm690 = vcmp.lt.s32.totalorder %v689, 2
        %vm691 = vcmp.eq.s32.totalorder %v689, 0
        %v692 = vxor.u32 %v686, 2147483648
        %v693 = vsel %vm691, %v685, %v692
        %vm694 = vcmp.eq.s32.totalorder %v689, 2
        %v695 = vxor.u32 %v685, 2147483648
        %v696 = vsel %vm694, %v695, %v686
        %v697 = vsel %vm690, %v693, %v696
        %v698 = vsel %vm687, nan, %v697
        %699 = vst [vmem:[%s134] sm:$0xff] %v698
        %s700 = sand.u32 %s71, 1
        %s701 = scalar_lea.sflag [#allocation3], %s700
        %s702 = sand.u32 %s71, 1
        %s703 = smul.addr %s702, 8
        %s704 = scalar_lea.vmem [#allocation2], %s703
        // Predicated region
        $region29: #{tpu_custom_call.1} parent=27 // pred_check
          %p705 = pneg %p81
        $region30: #{tpu_custom_call.1} parent=27 // pred_check_branch
          %707 = sbr.rel (%p705) target = $region32
        $region31: #{tpu_custom_call.1} parent=27 // pred_region
          %s709 = ssub.s32 128, 128
          %710 = vsyncadd %s701, %s709
          %s711 = smul.addr %s16, 128
          %s712 = scalar_lea.hbm %s2, %s711
          %s714 = sshll.u32 %s704, 4
          %s715 = int_to_ptr.vmem [resolvable:$true] %s714
          %717 = dma.vmem_to_hbm [thread:$0]  %s715, 128, %s712, %s701
        $region32: #{tpu_custom_call.1} parent=27 // pred_fallthru
          _
      $region28: #{tpu_custom_call.1} parent=5 // pred_fallthru
        _
      %p718 = scmp.le.s32.totalorder 2, %s11
      // Predicated region
      $region33: #{tpu_custom_call.1} parent=5 // pred_check
        %p719 = pneg %p718
      $region34: #{tpu_custom_call.1} parent=5 // pred_check_branch
        %721 = sbr.rel (%p719) target = $region36
      $region35: #{tpu_custom_call.1} parent=5 // pred_region
        %s722 = ssub.s32 %s11, 2
        // Predicated region
        $region37: #{tpu_custom_call.1} parent=35 // pred_check
          %p723 = pneg %p87
        $region38: #{tpu_custom_call.1} parent=35 // pred_check_branch
          %725 = sbr.rel (%p723) target = $region40
        $region39: #{tpu_custom_call.1} parent=35 // pred_region
          %s726 = sand.u32 %s72, 1
          %s727 = scalar_lea.sflag [#allocation3], %s726
          %s728 = sand.u32 %s72, 1
          %s729 = smul.addr %s728, 8
          %s730 = scalar_lea.vmem [#allocation2], %s729
          %731 = dma.done %s727, 128
        $region40: #{tpu_custom_call.1} parent=35 // pred_fallthru
          _
      $region36: #{tpu_custom_call.1} parent=5 // pred_fallthru
        _
    $region6: #{tpu_custom_call.1} parent=1 // loop_footer
      %s15 = sadd.s32 1, %s11
    $region7: #{tpu_custom_call.1} parent=1 // loop_footer_branch
      %10 = sbr.rel target = $region3
    $region8: #{tpu_custom_call.1} parent=1 // loop_exit
      _
    %732 = vsyncpa [#allocation3], 1
    %s733 = scalar_lea.sflag [#allocation3], 1
    %734 = vsyncpa %s733, 1

</llo_original>
